<compile_context>
chip_gen: v7x
topology: tpu7x:2x2x1
jax: 0.10.0
libtpu: 0.0.40
codegen_flags: <defaults>
</compile_context>

<pallas_src>
import jax
import jax.numpy as jnp
from jax.experimental import pallas as pl
from jax.experimental.pallas import tpu as pltpu


def _make_stem_kernel(*, Cin, KH, KW, W, M, K, K_pad):
    """Build the kernel closure with static shape parameters baked in."""
    taps = [(kh, kw) for kh in range(KH) for kw in range(KW)]

    def kernel(x_ref, mask_ref, w_ref, scale_ref, bias_ref, o_ref, p_scr):
        # x_ref:    (1, Cin, L)    flat, H-padded image (1 zero prepended on the
        #                          flat axis + zero tail), input dtype.
        # mask_ref: (2, M)         f32 border masks: row0 = (w != 0),
        #                          row1 = (w != W-1), flattened over H*W.
        # w_ref:    (Cout, K_pad)  f32 conv weights, K ordered (kh, kw, ci).
        # scale_ref,bias_ref: (Cout, 1) f32 BN(eval) scale / bias.
        # o_ref:    (1, Cout, M)   output, lanes = flattened H*W (final layout).
        # p_scr:    (K_pad, M)     f32 im2col scratch.

        # Zero the K-padding rows once per step (matching weight rows are 0 too).
        if K_pad > K:
            p_scr[K:K_pad, :] = jnp.zeros((K_pad - K, M), p_scr.dtype)

        # In-VMEM im2col: each tap is a contiguous lane slice of the flat image.
        for t, (kh, kw) in enumerate(taps):
            s = kh * W + kw                     # static slice start
            tap = x_ref[0, :, s:s + M].astype(jnp.float32)      # (Cin, M)
            if kw == 0:                          # left image border -> zero
                tap = tap * mask_ref[0:1, :]
            elif kw == KW - 1:                   # right image border -> zero
                tap = tap * mask_ref[1:2, :]
            p_scr[t * Cin:(t + 1) * Cin, :] = tap

        # Single MXU matmul, f32 accumulation.
        acc = jnp.dot(w_ref[...], p_scr[...], preferred_element_type=jnp.float32)

        # Fused BN(eval) + ReLU epilogue.
        y = acc * scale_ref[...] + bias_ref[...]
        o_ref[0] = jnp.maximum(y, 0.0).astype(o_ref.dtype)

    return kernel


def stem_forward(x_nchw, w_oihw, gamma, beta, running_mean, running_var, *,
                 eps=0.01, input_dtype=jnp.bfloat16, out_dtype=None):
    """Stem forward pass (NCHW in / NCHW out, matching the PyTorch module).

    input_dtype: dtype the image is shipped to the kernel in (bf16 default
      halves the input HBM traffic; all in-kernel math stays f32).
    out_dtype: output dtype (default: same as x).
    """
    N, Cin, H, W = x_nchw.shape
    Cout, Cin_w, KH, KW = w_oihw.shape
    assert Cin == Cin_w, "grouped conv not supported"
    assert KH == 3 and KW == 3, "only the module default kernel_size=3 is implemented"
    if out_dtype is None:
        out_dtype = x_nchw.dtype

    M = H * W                     # flattened spatial extent (lane axis)
    K = KH * KW * Cin             # contraction dim
    K_pad = ((K + 7) // 8) * 8    # pad K to a clean sublane multiple
    Hp = H + (KH - 1)             # H padded by 1 row top & bottom

    # Flat image length: max tap slice end, rounded up to a 128-lane multiple.
    L_needed = (KH - 1) * W + (KW - 1) + M      # == Hp*W + 2
    L = ((L_needed + 127) // 128) * 128

    # ---- input prep (fusible pad/reshape/pad pass, ~1.15x input bytes).
    xq = x_nchw.astype(input_dtype)
    xp = jnp.pad(xq, ((0, 0), (0, 0), (1, 1), (0, 0)))          # pad H only
    xf = xp.reshape(N, Cin, Hp * W)
    # Prepend one zero (so tap offsets kh*W+kw are all >= 0) + zero tail.
    xf = jnp.pad(xf, ((0, 0), (0, 0), (1, L - 1 - Hp * W)))     # (N, Cin, L)

    # ---- column-border masks for the kw=0 / kw=2 taps (built once, tiny).
    col = jnp.arange(M, dtype=jnp.int32) % W
    border = jnp.stack([(col != 0), (col != W - 1)], axis=0).astype(jnp.float32)

    # ---- BatchNorm (inference) as a f32 epilogue scale/bias.
    scale = gamma.astype(jnp.float32) / jnp.sqrt(
        running_var.astype(jnp.float32) + eps)                  # (Cout,)
    bias = beta.astype(jnp.float32) - running_mean.astype(jnp.float32) * scale
    scale_col = scale.reshape(Cout, 1)
    bias_col = bias.reshape(Cout, 1)

    # ---- conv weights, K ordered (kh, kw, ci) to match the scratch layout.
    wk = jnp.transpose(w_oihw.astype(jnp.float32), (0, 2, 3, 1)).reshape(Cout, K)
    wk = jnp.pad(wk, ((0, 0), (0, K_pad - K)))                  # (Cout, K_pad)

    kernel = _make_stem_kernel(Cin=Cin, KH=KH, KW=KW, W=W, M=M, K=K, K_pad=K_pad)

    out = pl.pallas_call(
        kernel,
        out_shape=jax.ShapeDtypeStruct((N, Cout, M), out_dtype),
        grid_spec=pltpu.PrefetchScalarGridSpec(
            num_scalar_prefetch=0,
            grid=(N,),                               # one image per grid step
            in_specs=[
                pl.BlockSpec((1, Cin, L), lambda n: (n, 0, 0)),
                pl.BlockSpec((2, M), lambda n: (0, 0)),
                pl.BlockSpec((Cout, K_pad), lambda n: (0, 0)),
                pl.BlockSpec((Cout, 1), lambda n: (0, 0)),
                pl.BlockSpec((Cout, 1), lambda n: (0, 0)),
            ],
            out_specs=pl.BlockSpec((1, Cout, M), lambda n: (n, 0, 0)),
            scratch_shapes=[pltpu.VMEM((K_pad, M), jnp.float32)],
        ),
        compiler_params=pltpu.CompilerParams(
            dimension_semantics=("parallel",),
            vmem_limit_bytes=32 * 1024 * 1024,
        ),
    )(xf, border, wk, scale_col, bias_col)

    # (N, Cout, H*W) is flattened NCHW already -> contiguous reshape, no copy.
    return out.reshape(N, Cout, H, W)


def _reference_forward(x_nchw, w_oihw, gamma, beta, running_mean, running_var,
                       *, eps=0.01):
    """Pure-JAX reference (lax.conv + BN(eval) + ReLU)."""
    y = jax.lax.conv_general_dilated(
        x_nchw.astype(jnp.float32), w_oihw.astype(jnp.float32),
        window_strides=(1, 1), padding="SAME",
        dimension_numbers=("NCHW", "OIHW", "NCHW"))
    scale = gamma / jnp.sqrt(running_var + eps)
    bias = beta - running_mean * scale
    y = y * scale[None, :, None, None] + bias[None, :, None, None]
    return jnp.maximum(y, 0.0)


if __name__ == "__main__":
    # Small shapes consistent with the module: N=2, Cin=4, H=W=16, Cout=32.
    N, Cin, H, W = 2, 4, 16, 16
    Cout, Kk = 32, 3

    key = jax.random.PRNGKey(0)
    kx, kw = jax.random.split(key)
    x = jax.random.normal(kx, (N, Cin, H, W), dtype=jnp.float32)

    # Conv weight: Kaiming-style init (no bias, as in the module).
    fan_in = Cin * Kk * Kk
    w = jax.random.normal(kw, (Cout, Cin, Kk, Kk), dtype=jnp.float32)
    w = w * (2.0 / fan_in) ** 0.5

    # BatchNorm params as freshly initialized by PyTorch.
    gamma = jnp.ones((Cout,), jnp.float32)
    beta = jnp.zeros((Cout,), jnp.float32)
    running_mean = jnp.zeros((Cout,), jnp.float32)
    running_var = jnp.ones((Cout,), jnp.float32)

    ref = _reference_forward(x, w, gamma, beta, running_mean, running_var)

    # f32 input path: tight tolerance against the XLA conv reference.
    out_f32 = stem_forward(x, w, gamma, beta, running_mean, running_var,
                           input_dtype=jnp.float32)
    out_f32 = jax.block_until_ready(out_f32)
    assert out_f32.shape == (N, Cout, H, W)
    assert jnp.allclose(out_f32, ref, atol=2e-3, rtol=2e-3)

    # Default (bf16 input DMA, f32 accumulation) — the bandwidth-optimal path.
    out_bf16 = stem_forward(x, w, gamma, beta, running_mean, running_var)
    out_bf16 = jax.block_until_ready(out_bf16)
    assert out_bf16.shape == (N, Cout, H, W)
    assert jnp.allclose(out_bf16, ref, atol=5e-2, rtol=5e-2)

    print("KERNEL_OK")
</pallas_src>

<mosaic_0001>
module attributes {stable_mosaic.version = 11 : i64} {
  func.func @kernel(%arg0: i32, %arg1: memref<1x4x384xf32, #tpu.memory_space<vmem>>, %arg2: memref<2x256xf32, #tpu.memory_space<vmem>>, %arg3: memref<32x40xf32, #tpu.memory_space<vmem>>, %arg4: memref<32x1xf32, #tpu.memory_space<vmem>>, %arg5: memref<32x1xf32, #tpu.memory_space<vmem>>, %arg6: memref<1x32x256xf32, #tpu.memory_space<vmem>>, %arg7: memref<40x256xf32, #tpu.memory_space<vmem>>) attributes {dimension_semantics = [#tpu.dimension_semantics<parallel>], iteration_bounds = array<i64: 2>, scalar_prefetch = 0 : i64, scratch_operands = 1 : i64, tpu.core_type = #tpu.core_type<tc>, window_params = [{transform_indices = @transform_0, window_bounds = array<i64: 1, 4, 384>}, {pipeline_mode = #tpu.pipeline_mode<synchronous>, transform_indices = @transform_1, window_bounds = array<i64: 2, 256>}, {pipeline_mode = #tpu.pipeline_mode<synchronous>, transform_indices = @transform_2, window_bounds = array<i64: 32, 40>}, {pipeline_mode = #tpu.pipeline_mode<synchronous>, transform_indices = @transform_3, window_bounds = array<i64: 32, 1>}, {pipeline_mode = #tpu.pipeline_mode<synchronous>, transform_indices = @transform_4, window_bounds = array<i64: 32, 1>}, {transform_indices = @transform_5, window_bounds = array<i64: 1, 32, 256>}]} {
    %cst = arith.constant 0.000000e+00 : f32
    %0 = vector.broadcast %cst : f32 to vector<4x256xf32>
    %c36 = arith.constant 36 : index
    %c0 = arith.constant 0 : index
    %1 = vector.load %arg7[%c36, %c0] : memref<40x256xf32, #tpu.memory_space<vmem>>, vector<4x256xf32>
    tpu.vector_store %arg7[%c36, %c0], %0 {strides = array<i32>} : memref<40x256xf32, #tpu.memory_space<vmem>>, vector<4x256xf32>,
    %c0_0 = arith.constant 0 : index
    %c0_1 = arith.constant 0 : index
    %c0_2 = arith.constant 0 : index
    %2 = vector.load %arg1[%c0_0, %c0_1, %c0_2] : memref<1x4x384xf32, #tpu.memory_space<vmem>>, vector<1x4x256xf32>
    %3 = vector.shape_cast %2 : vector<1x4x256xf32> to vector<4x256xf32>
    %c0_3 = arith.constant 0 : index
    %c0_4 = arith.constant 0 : index
    %4 = vector.load %arg2[%c0_3, %c0_4] : memref<2x256xf32, #tpu.memory_space<vmem>>, vector<1x256xf32>
    %5 = vector.broadcast %4 : vector<1x256xf32> to vector<4x256xf32>
    %6 = arith.mulf %3, %5 : vector<4x256xf32>
    %c0_5 = arith.constant 0 : index
    %c0_6 = arith.constant 0 : index
    %7 = vector.load %arg7[%c0_5, %c0_6] : memref<40x256xf32, #tpu.memory_space<vmem>>, vector<4x256xf32>
    tpu.vector_store %arg7[%c0_5, %c0_6], %6 {strides = array<i32>} : memref<40x256xf32, #tpu.memory_space<vmem>>, vector<4x256xf32>,
    %c0_7 = arith.constant 0 : index
    %c0_8 = arith.constant 0 : index
    %c1 = arith.constant 1 : index
    %8 = vector.load %arg1[%c0_7, %c0_8, %c1] : memref<1x4x384xf32, #tpu.memory_space<vmem>>, vector<1x4x256xf32>
    %9 = vector.shape_cast %8 : vector<1x4x256xf32> to vector<4x256xf32>
    %c4 = arith.constant 4 : index
    %c0_9 = arith.constant 0 : index
    %10 = vector.load %arg7[%c4, %c0_9] : memref<40x256xf32, #tpu.memory_space<vmem>>, vector<4x256xf32>
    tpu.vector_store %arg7[%c4, %c0_9], %9 {strides = array<i32>} : memref<40x256xf32, #tpu.memory_space<vmem>>, vector<4x256xf32>,
    %c0_10 = arith.constant 0 : index
    %c0_11 = arith.constant 0 : index
    %c2 = arith.constant 2 : index
    %11 = vector.load %arg1[%c0_10, %c0_11, %c2] : memref<1x4x384xf32, #tpu.memory_space<vmem>>, vector<1x4x256xf32>
    %12 = vector.shape_cast %11 : vector<1x4x256xf32> to vector<4x256xf32>
    %c1_12 = arith.constant 1 : index
    %c0_13 = arith.constant 0 : index
    %13 = vector.load %arg2[%c1_12, %c0_13] : memref<2x256xf32, #tpu.memory_space<vmem>>, vector<1x256xf32>
    %14 = vector.broadcast %13 : vector<1x256xf32> to vector<4x256xf32>
    %15 = arith.mulf %12, %14 : vector<4x256xf32>
    %c8 = arith.constant 8 : index
    %c0_14 = arith.constant 0 : index
    %16 = vector.load %arg7[%c8, %c0_14] : memref<40x256xf32, #tpu.memory_space<vmem>>, vector<4x256xf32>
    tpu.vector_store %arg7[%c8, %c0_14], %15 {strides = array<i32>} : memref<40x256xf32, #tpu.memory_space<vmem>>, vector<4x256xf32>,
    %c0_15 = arith.constant 0 : index
    %c0_16 = arith.constant 0 : index
    %c16 = arith.constant 16 : index
    %17 = vector.load %arg1[%c0_15, %c0_16, %c16] : memref<1x4x384xf32, #tpu.memory_space<vmem>>, vector<1x4x256xf32>
    %18 = vector.shape_cast %17 : vector<1x4x256xf32> to vector<4x256xf32>
    %c0_17 = arith.constant 0 : index
    %c0_18 = arith.constant 0 : index
    %19 = vector.load %arg2[%c0_17, %c0_18] : memref<2x256xf32, #tpu.memory_space<vmem>>, vector<1x256xf32>
    %20 = vector.broadcast %19 : vector<1x256xf32> to vector<4x256xf32>
    %21 = arith.mulf %18, %20 : vector<4x256xf32>
    %c12 = arith.constant 12 : index
    %c0_19 = arith.constant 0 : index
    %22 = vector.load %arg7[%c12, %c0_19] : memref<40x256xf32, #tpu.memory_space<vmem>>, vector<4x256xf32>
    tpu.vector_store %arg7[%c12, %c0_19], %21 {strides = array<i32>} : memref<40x256xf32, #tpu.memory_space<vmem>>, vector<4x256xf32>,
    %c0_20 = arith.constant 0 : index
    %c0_21 = arith.constant 0 : index
    %c17 = arith.constant 17 : index
    %23 = vector.load %arg1[%c0_20, %c0_21, %c17] : memref<1x4x384xf32, #tpu.memory_space<vmem>>, vector<1x4x256xf32>
    %24 = vector.shape_cast %23 : vector<1x4x256xf32> to vector<4x256xf32>
    %c16_22 = arith.constant 16 : index
    %c0_23 = arith.constant 0 : index
    %25 = vector.load %arg7[%c16_22, %c0_23] : memref<40x256xf32, #tpu.memory_space<vmem>>, vector<4x256xf32>
    tpu.vector_store %arg7[%c16_22, %c0_23], %24 {strides = array<i32>} : memref<40x256xf32, #tpu.memory_space<vmem>>, vector<4x256xf32>,
    %c0_24 = arith.constant 0 : index
    %c0_25 = arith.constant 0 : index
    %c18 = arith.constant 18 : index
    %26 = vector.load %arg1[%c0_24, %c0_25, %c18] : memref<1x4x384xf32, #tpu.memory_space<vmem>>, vector<1x4x256xf32>
    %27 = vector.shape_cast %26 : vector<1x4x256xf32> to vector<4x256xf32>
    %c1_26 = arith.constant 1 : index
    %c0_27 = arith.constant 0 : index
    %28 = vector.load %arg2[%c1_26, %c0_27] : memref<2x256xf32, #tpu.memory_space<vmem>>, vector<1x256xf32>
    %29 = vector.broadcast %28 : vector<1x256xf32> to vector<4x256xf32>
    %30 = arith.mulf %27, %29 : vector<4x256xf32>
    %c20 = arith.constant 20 : index
    %c0_28 = arith.constant 0 : index
    %31 = vector.load %arg7[%c20, %c0_28] : memref<40x256xf32, #tpu.memory_space<vmem>>, vector<4x256xf32>
    tpu.vector_store %arg7[%c20, %c0_28], %30 {strides = array<i32>} : memref<40x256xf32, #tpu.memory_space<vmem>>, vector<4x256xf32>,
    %c0_29 = arith.constant 0 : index
    %c0_30 = arith.constant 0 : index
    %c32 = arith.constant 32 : index
    %32 = vector.load %arg1[%c0_29, %c0_30, %c32] : memref<1x4x384xf32, #tpu.memory_space<vmem>>, vector<1x4x256xf32>
    %33 = vector.shape_cast %32 : vector<1x4x256xf32> to vector<4x256xf32>
    %c0_31 = arith.constant 0 : index
    %c0_32 = arith.constant 0 : index
    %34 = vector.load %arg2[%c0_31, %c0_32] : memref<2x256xf32, #tpu.memory_space<vmem>>, vector<1x256xf32>
    %35 = vector.broadcast %34 : vector<1x256xf32> to vector<4x256xf32>
    %36 = arith.mulf %33, %35 : vector<4x256xf32>
    %c24 = arith.constant 24 : index
    %c0_33 = arith.constant 0 : index
    %37 = vector.load %arg7[%c24, %c0_33] : memref<40x256xf32, #tpu.memory_space<vmem>>, vector<4x256xf32>
    tpu.vector_store %arg7[%c24, %c0_33], %36 {strides = array<i32>} : memref<40x256xf32, #tpu.memory_space<vmem>>, vector<4x256xf32>,
    %c0_34 = arith.constant 0 : index
    %c0_35 = arith.constant 0 : index
    %c33 = arith.constant 33 : index
    %38 = vector.load %arg1[%c0_34, %c0_35, %c33] : memref<1x4x384xf32, #tpu.memory_space<vmem>>, vector<1x4x256xf32>
    %39 = vector.shape_cast %38 : vector<1x4x256xf32> to vector<4x256xf32>
    %c28 = arith.constant 28 : index
    %c0_36 = arith.constant 0 : index
    %40 = vector.load %arg7[%c28, %c0_36] : memref<40x256xf32, #tpu.memory_space<vmem>>, vector<4x256xf32>
    tpu.vector_store %arg7[%c28, %c0_36], %39 {strides = array<i32>} : memref<40x256xf32, #tpu.memory_space<vmem>>, vector<4x256xf32>,
    %c0_37 = arith.constant 0 : index
    %c0_38 = arith.constant 0 : index
    %c34 = arith.constant 34 : index
    %41 = vector.load %arg1[%c0_37, %c0_38, %c34] : memref<1x4x384xf32, #tpu.memory_space<vmem>>, vector<1x4x256xf32>
    %42 = vector.shape_cast %41 : vector<1x4x256xf32> to vector<4x256xf32>
    %c1_39 = arith.constant 1 : index
    %c0_40 = arith.constant 0 : index
    %43 = vector.load %arg2[%c1_39, %c0_40] : memref<2x256xf32, #tpu.memory_space<vmem>>, vector<1x256xf32>
    %44 = vector.broadcast %43 : vector<1x256xf32> to vector<4x256xf32>
    %45 = arith.mulf %42, %44 : vector<4x256xf32>
    %c32_41 = arith.constant 32 : index
    %c0_42 = arith.constant 0 : index
    %46 = vector.load %arg7[%c32_41, %c0_42] : memref<40x256xf32, #tpu.memory_space<vmem>>, vector<4x256xf32>
    tpu.vector_store %arg7[%c32_41, %c0_42], %45 {strides = array<i32>} : memref<40x256xf32, #tpu.memory_space<vmem>>, vector<4x256xf32>,
    %c0_43 = arith.constant 0 : index
    %c0_44 = arith.constant 0 : index
    %47 = vector.load %arg3[%c0_43, %c0_44] : memref<32x40xf32, #tpu.memory_space<vmem>>, vector<32x40xf32>
    %c0_45 = arith.constant 0 : index
    %c0_46 = arith.constant 0 : index
    %48 = vector.load %arg7[%c0_45, %c0_46] : memref<40x256xf32, #tpu.memory_space<vmem>>, vector<40x256xf32>
    %cst_47 = arith.constant dense<0.000000e+00> : vector<32x256xf32>
    %49 = tpu.matmul %47, %48, %cst_47 {dimension_numbers = #tpu.dot_dimension_numbers<[1], [0], [0], [1], [0, 0, 1, 1], [], []>} : vector<32x40xf32>, vector<40x256xf32>, vector<32x256xf32> -> vector<32x256xf32>
    %c0_48 = arith.constant 0 : index
    %c0_49 = arith.constant 0 : index
    %50 = vector.load %arg4[%c0_48, %c0_49] : memref<32x1xf32, #tpu.memory_space<vmem>>, vector<32x1xf32>
    %51 = vector.broadcast %50 : vector<32x1xf32> to vector<32x256xf32>
    %52 = arith.mulf %49, %51 : vector<32x256xf32>
    %c0_50 = arith.constant 0 : index
    %c0_51 = arith.constant 0 : index
    %53 = vector.load %arg5[%c0_50, %c0_51] : memref<32x1xf32, #tpu.memory_space<vmem>>, vector<32x1xf32>
    %54 = vector.broadcast %53 : vector<32x1xf32> to vector<32x256xf32>
    %55 = arith.addf %52, %54 : vector<32x256xf32>
    %cst_52 = arith.constant 0.000000e+00 : f32
    %56 = vector.broadcast %cst_52 : f32 to vector<32x256xf32>
    %57 = arith.maximumf %55, %56 : vector<32x256xf32>
    %c0_53 = arith.constant 0 : index
    %c0_54 = arith.constant 0 : index
    %c0_55 = arith.constant 0 : index
    %58 = vector.load %arg6[%c0_53, %c0_54, %c0_55] : memref<1x32x256xf32, #tpu.memory_space<vmem>>, vector<1x32x256xf32>
    %59 = vector.shape_cast %58 : vector<1x32x256xf32> to vector<32x256xf32>
    %60 = vector.shape_cast %57 : vector<32x256xf32> to vector<1x32x256xf32>
    tpu.vector_store %arg6[%c0_53, %c0_54, %c0_55], %60 {strides = array<i32>} : memref<1x32x256xf32, #tpu.memory_space<vmem>>, vector<1x32x256xf32>,
    return
  }
  func.func @transform_0(%arg0: i32) -> (i32, i32, i32) {
    %c0_i32 = arith.constant 0 : i32
    %c0_i32_0 = arith.constant 0 : i32
    %c0_i32_1 = arith.constant 0 : i32
    return %arg0, %c0_i32, %c0_i32_0 : i32, i32, i32
  }
  func.func @transform_1(%arg0: i32) -> (i32, i32) {
    %c0_i32 = arith.constant 0 : i32
    %c0_i32_0 = arith.constant 0 : i32
    %c0_i32_1 = arith.constant 0 : i32
    return %c0_i32, %c0_i32_0 : i32, i32
  }
  func.func @transform_2(%arg0: i32) -> (i32, i32) {
    %c0_i32 = arith.constant 0 : i32
    %c0_i32_0 = arith.constant 0 : i32
    %c0_i32_1 = arith.constant 0 : i32
    return %c0_i32, %c0_i32_0 : i32, i32
  }
  func.func @transform_3(%arg0: i32) -> (i32, i32) {
    %c0_i32 = arith.constant 0 : i32
    %c0_i32_0 = arith.constant 0 : i32
    %c0_i32_1 = arith.constant 0 : i32
    return %c0_i32, %c0_i32_0 : i32, i32
  }
  func.func @transform_4(%arg0: i32) -> (i32, i32) {
    %c0_i32 = arith.constant 0 : i32
    %c0_i32_0 = arith.constant 0 : i32
    %c0_i32_1 = arith.constant 0 : i32
    return %c0_i32, %c0_i32_0 : i32, i32
  }
  func.func @transform_5(%arg0: i32) -> (i32, i32, i32) {
    %c0_i32 = arith.constant 0 : i32
    %c0_i32_0 = arith.constant 0 : i32
    %c0_i32_1 = arith.constant 0 : i32
    return %arg0, %c0_i32, %c0_i32_0 : i32, i32, i32
  }
}

</mosaic_0001>

<llo_original>
// kernel: tpu_custom_call.1
$region0: #{tpu_custom_call.1}
  #allocation0 [shape = 'u32[]', space=smem, size = 0x4, offset = 0x4, fixed_abs, tag = 'smem constant byte address 0x4 - core index']
  #allocation1 [shape = 'u32[144,128]{1,0:T(1,128)}', space=vmem, size = 0x12000, scoped, tag = 'internal scratch']
  #allocation2 [shape = 'f32[40,256]{1,0:T(8,128)}', space=vmem, size = 0xa000, scoped, tag = 'scratch operand']
  %s0 = inlined_call_operand.vmem [shape: f32[2,4,384], index: 0, kind: input, shape index: {}]
  %s1 = inlined_call_operand.vmem [shape: f32[2,256], index: 1, kind: input, shape index: {}]
  %s2 = inlined_call_operand.vmem [shape: f32[32,40], index: 2, kind: input, shape index: {}]
  %s3 = inlined_call_operand.vmem [shape: f32[32,1], index: 3, kind: input, shape index: {}]
  %s4 = inlined_call_operand.vmem [shape: f32[32,1], index: 4, kind: input, shape index: {}]
  %s5 = inlined_call_operand.hbm [shape: f32[2,32,256], index: 5, kind: output, shape index: {}]
  %s6 = sld [smem:[#allocation0]]
  $region53: #{tpu_custom_call.1} parent=0
    _
  %s8 = ssub.s32 1, %s6
  %s9 = scalar_select 0, %s8, %s6
  $region1: #{tpu_custom_call.1} parent=0
    #allocation3 [shape = 'u8[65536]{0}', space=vmem, size = 0x10000, scoped, tag = 'output window, operand 0']
    #allocation4 [shape = 's32[2]{0}', space=sflag, size = 0x8, scoped, tag = 'scoped memory for tpu_custom_call.1']
    %10 = vsyncpa [#allocation4], 0
    %s11 = scalar_lea.sflag [#allocation4], 1
    %12 = vsyncpa %s11, 0
    loop: start=0, step=1, limit=4
    $region2: #{tpu_custom_call.1} parent=1 // loop_pre_header
      _
    $region3: #{tpu_custom_call.1} parent=1 // loop_header
      %s14 = sphi 0, %s18
      %p15 = scmp.ge.s32.totalorder %s14, 4
      %s24 = sphi 0, %s26
      %s27 = sphi 0, %s24
      %s28 = sphi 0, %s27
      %s44 = sphi 0, %s28
      %s48 = sphi 0, %s48
      %s50 = sphi 0, %s48
      %s51 = sphi 0, %s50
      %s65 = sphi 0, %s51
      %s69 = sphi 0, %s69
      %s71 = sphi 0, %s69
      %s72 = sphi 0, %s71
      %s86 = sphi 0, %s72
      %s90 = sphi 0, %s90
      %s92 = sphi 0, %s90
      %s93 = sphi 0, %s92
      %s107 = sphi 0, %s93
      %s111 = sphi 0, %s111
      %s113 = sphi 0, %s111
      %s114 = sphi 0, %s113
      %s128 = sphi 0, %s114
      %s134 = sphi 0, %s136
      %s137 = sphi 0, %s134
      %s138 = sphi 0, %s137
      %s154 = sphi 0, %s138
    $region4: #{tpu_custom_call.1} parent=1 // loop_header_branch
      %17 = sbr.rel (%p15) target = $region8
    $region5: #{tpu_custom_call.1} parent=1 // loop_body
      %s19 = ssub.s32 %s14, 1
      %s20 = ssub.s32 %s14, 2
      %s21 = sadd.s32 %s14, 1
      %s22 = ssub.s32 %s14, %s21
      %p23 = scmp.eq.s32.totalorder %s22, 0
      %s25 = sadd.s32 %s24, 1
      %s26 = scalar_select %p23, %s24, %s25
      %p29 = pneg %p23
      %p30 = scmp.eq.s32.totalorder %s14, 1
      %p31 = por %p29, %p30
      %p32 = scmp.ne.s32.totalorder %s24, %s27
      %p33 = scmp.eq.s32.totalorder %s14, 0
      %p34 = por %p32, %p33
      %p35 = scmp.ne.s32.totalorder %s24, %s27
      %p36 = scmp.eq.s32.totalorder %s19, 1
      %p37 = por %p35, %p36
      %p38 = scmp.ne.s32.totalorder %s27, %s28
      %p39 = scmp.eq.s32.totalorder %s19, 0
      %p40 = por %p38, %p39
      %p41 = scmp.ne.s32.totalorder %s27, %s28
      %p42 = scmp.eq.s32.totalorder %s20, 1
      %p43 = por %p41, %p42
      %p45 = scmp.ne.s32.totalorder %s28, %s44
      %p46 = scmp.eq.s32.totalorder %s20, 0
      %p47 = por %p45, %p46
      %s49 = sadd.s32 %s48, 1
      %p52 = scmp.eq.s32.totalorder %s14, 1
      %p53 = scmp.ne.s32.totalorder %s48, %s50
      %p54 = scmp.eq.s32.totalorder %s14, 0
      %p55 = por %p53, %p54
      %p56 = scmp.ne.s32.totalorder %s48, %s50
      %p57 = scmp.eq.s32.totalorder %s19, 1
      %p58 = por %p56, %p57
      %p59 = scmp.ne.s32.totalorder %s50, %s51
      %p60 = scmp.eq.s32.totalorder %s19, 0
      %p61 = por %p59, %p60
      %p62 = scmp.ne.s32.totalorder %s50, %s51
      %p63 = scmp.eq.s32.totalorder %s20, 1
      %p64 = por %p62, %p63
      %p66 = scmp.ne.s32.totalorder %s51, %s65
      %p67 = scmp.eq.s32.totalorder %s20, 0
      %p68 = por %p66, %p67
      %s70 = sadd.s32 %s69, 1
      %p73 = scmp.eq.s32.totalorder %s14, 1
      %p74 = scmp.ne.s32.totalorder %s69, %s71
      %p75 = scmp.eq.s32.totalorder %s14, 0
      %p76 = por %p74, %p75
      %p77 = scmp.ne.s32.totalorder %s69, %s71
      %p78 = scmp.eq.s32.totalorder %s19, 1
      %p79 = por %p77, %p78
      %p80 = scmp.ne.s32.totalorder %s71, %s72
      %p81 = scmp.eq.s32.totalorder %s19, 0
      %p82 = por %p80, %p81
      %p83 = scmp.ne.s32.totalorder %s71, %s72
      %p84 = scmp.eq.s32.totalorder %s20, 1
      %p85 = por %p83, %p84
      %p87 = scmp.ne.s32.totalorder %s72, %s86
      %p88 = scmp.eq.s32.totalorder %s20, 0
      %p89 = por %p87, %p88
      %s91 = sadd.s32 %s90, 1
      %p94 = scmp.eq.s32.totalorder %s14, 1
      %p95 = scmp.ne.s32.totalorder %s90, %s92
      %p96 = scmp.eq.s32.totalorder %s14, 0
      %p97 = por %p95, %p96
      %p98 = scmp.ne.s32.totalorder %s90, %s92
      %p99 = scmp.eq.s32.totalorder %s19, 1
      %p100 = por %p98, %p99
      %p101 = scmp.ne.s32.totalorder %s92, %s93
      %p102 = scmp.eq.s32.totalorder %s19, 0
      %p103 = por %p101, %p102
      %p104 = scmp.ne.s32.totalorder %s92, %s93
      %p105 = scmp.eq.s32.totalorder %s20, 1
      %p106 = por %p104, %p105
      %p108 = scmp.ne.s32.totalorder %s93, %s107
      %p109 = scmp.eq.s32.totalorder %s20, 0
      %p110 = por %p108, %p109
      %s112 = sadd.s32 %s111, 1
      %p115 = scmp.eq.s32.totalorder %s14, 1
      %p116 = scmp.ne.s32.totalorder %s111, %s113
      %p117 = scmp.eq.s32.totalorder %s14, 0
      %p118 = por %p116, %p117
      %p119 = scmp.ne.s32.totalorder %s111, %s113
      %p120 = scmp.eq.s32.totalorder %s19, 1
      %p121 = por %p119, %p120
      %p122 = scmp.ne.s32.totalorder %s113, %s114
      %p123 = scmp.eq.s32.totalorder %s19, 0
      %p124 = por %p122, %p123
      %p125 = scmp.ne.s32.totalorder %s113, %s114
      %p126 = scmp.eq.s32.totalorder %s20, 1
      %p127 = por %p125, %p126
      %p129 = scmp.ne.s32.totalorder %s114, %s128
      %p130 = scmp.eq.s32.totalorder %s20, 0
      %p131 = por %p129, %p130
      %s132 = ssub.s32 %s14, %s21
      %p133 = scmp.eq.s32.totalorder %s132, 0
      %s135 = sadd.s32 %s134, 1
      %s136 = scalar_select %p133, %s134, %s135
      %p139 = pneg %p133
      %p140 = scmp.eq.s32.totalorder %s14, 1
      %p141 = por %p139, %p140
      %p142 = scmp.ne.s32.totalorder %s134, %s137
      %p143 = scmp.eq.s32.totalorder %s14, 0
      %p144 = por %p142, %p143
      %p145 = scmp.ne.s32.totalorder %s134, %s137
      %p146 = scmp.eq.s32.totalorder %s19, 1
      %p147 = por %p145, %p146
      %p148 = scmp.ne.s32.totalorder %s137, %s138
      %p149 = scmp.eq.s32.totalorder %s19, 0
      %p150 = por %p148, %p149
      %p151 = scmp.ne.s32.totalorder %s137, %s138
      %p152 = scmp.eq.s32.totalorder %s20, 1
      %p153 = por %p151, %p152
      %p155 = scmp.ne.s32.totalorder %s138, %s154
      %p156 = scmp.eq.s32.totalorder %s20, 0
      %p157 = por %p155, %p156
      %p158 = scmp.le.s32.totalorder 1, %s14
      %p159 = scmp.lt.s32.totalorder %s14, 3
      %p160 = pnand %p158, %p159
      %p161 = pneg %p160
      // Predicated region
      $region9: #{tpu_custom_call.1} parent=5 // pred_check
        _
      $region10: #{tpu_custom_call.1} parent=5 // pred_check_branch
        %163 = sbr.rel (%p160) target = $region12
      $region11: #{tpu_custom_call.1} parent=5 // pred_region
        %s164 = ssub.s32 %s14, 1
        // Predicated region
        $region13: #{tpu_custom_call.1} parent=11 // pred_check
          %p165 = pneg %p61
        $region14: #{tpu_custom_call.1} parent=11 // pred_check_branch
          %167 = sbr.rel (%p165) target = $region16
        $region15: #{tpu_custom_call.1} parent=11 // pred_region
          _
        $region16: #{tpu_custom_call.1} parent=11 // pred_fallthru
          _
        // Predicated region
        $region17: #{tpu_custom_call.1} parent=11 // pred_check
          %p168 = pneg %p82
        $region18: #{tpu_custom_call.1} parent=11 // pred_check_branch
          %170 = sbr.rel (%p168) target = $region20
        $region19: #{tpu_custom_call.1} parent=11 // pred_region
          _
        $region20: #{tpu_custom_call.1} parent=11 // pred_fallthru
          _
        // Predicated region
        $region21: #{tpu_custom_call.1} parent=11 // pred_check
          %p171 = pneg %p103
        $region22: #{tpu_custom_call.1} parent=11 // pred_check_branch
          %173 = sbr.rel (%p171) target = $region24
        $region23: #{tpu_custom_call.1} parent=11 // pred_region
          _
        $region24: #{tpu_custom_call.1} parent=11 // pred_fallthru
          _
        // Predicated region
        $region25: #{tpu_custom_call.1} parent=11 // pred_check
          %p174 = pneg %p124
        $region26: #{tpu_custom_call.1} parent=11 // pred_check_branch
          %176 = sbr.rel (%p174) target = $region28
        $region27: #{tpu_custom_call.1} parent=11 // pred_region
          _
        $region28: #{tpu_custom_call.1} parent=11 // pred_fallthru
          _
      $region12: #{tpu_custom_call.1} parent=5 // pred_fallthru
        _
      %p177 = scmp.lt.s32.totalorder %s14, 2
      // Predicated region
      $region29: #{tpu_custom_call.1} parent=5 // pred_check
        %p178 = pneg %p177
      $region30: #{tpu_custom_call.1} parent=5 // pred_check_branch
        %180 = sbr.rel (%p178) target = $region32
      $region31: #{tpu_custom_call.1} parent=5 // pred_region
        // Predicated region
        $region33: #{tpu_custom_call.1} parent=31 // pred_check
          %p181 = pneg %p34
        $region34: #{tpu_custom_call.1} parent=31 // pred_check_branch
          %183 = sbr.rel (%p181) target = $region36
        $region35: #{tpu_custom_call.1} parent=31 // pred_region
          %p184 = scmp.lt.s32.totalorder %s14, 1
          %s185 = scalar_select %p184, %s14, 1
          %s186 = smul.addr %s185, 3
          %s187 = smul.addr %s186, 4
          %s188 = scalar_lea.vmem %s0, %s187
        $region36: #{tpu_custom_call.1} parent=31 // pred_fallthru
          _
      $region32: #{tpu_custom_call.1} parent=5 // pred_fallthru
        _
      %p189 = scmp.le.s32.totalorder 1, %s14
      %p190 = scmp.lt.s32.totalorder %s14, 3
      %p191 = pnand %p189, %p190
      %p192 = pneg %p191
      // Predicated region
      $region37: #{tpu_custom_call.1} parent=5 // pred_check
        _
      $region38: #{tpu_custom_call.1} parent=5 // pred_check_branch
        %194 = sbr.rel (%p191) target = $region40
      $region39: #{tpu_custom_call.1} parent=5 // pred_region
        %s195 = ssub.s32 %s14, 1
        %p196 = scmp.lt.s32.totalorder %s19, 1
        %s197 = scalar_select %p196, %s19, 1
        %s198 = smul.addr %s197, 3
        %s199 = smul.addr %s198, 4
        %s200 = scalar_lea.vmem %s0, %s199
        %p201 = pneg %p40
        %p202 = pneg %p37
        %p203 = pneg %p61
        %p204 = pneg %p58
        %p205 = pneg %p82
        %p206 = pneg %p79
        %p207 = pneg %p103
        %p208 = pneg %p100
        %p209 = pneg %p124
        %p210 = pneg %p121
        %p211 = pneg %p150
        %p212 = pneg %p147
        %s213 = sand.u32 %s137, 1
        %s214 = scalar_lea.sflag [#allocation4], %s213
        %s215 = sand.u32 %s137, 1
        %s216 = smul.addr %s215, 64
        %s217 = scalar_lea.vmem [#allocation3], %s216
        %p218 = scmp.lt.s32.totalorder %s19, 1
        %s219 = scalar_select %p218, %s19, 1
        %s220 = smul.addr %s219, 3
        %s221 = smul.addr %s220, 4
        %s222 = scalar_lea.vmem %s0, %s221
        %223 = vst [vmem:[#allocation2 + $0x40] sm:$0xf0] 0.0
        %224 = vst [vmem:[#allocation2 + $0x48] sm:$0xf0] 0.0
        %v225 = vld [vmem:[%s222] sm:$0xff]
        %v226 = vld [vmem:[%s1] ss:$2 sm:$0x3]
        %v228 = vlaneseq
        %v229 = vshrl.u32 %v228, 7
        %v230 = vsub.s32 0, %v229
        %v231 = vrot.slane %v226, %v230
        %v232 = vlaneseq
        %v233 = vshrl.u32 %v232, 7
        %v234 = vsub.s32 1, %v233
        %v235 = vrot.slane %v226, %v234
        %v236 = vcombine.low %v231, %v235
        %v238 = vmul.f32 %v225, %v236
        %v240 = vcombine.high %v238, %v238
        %242 = vst [vmem:[#allocation2] sm:$0xf] %v238
        %243 = vst [vmem:[#allocation2 + $0x8] sm:$0xf] %v240
        %v244 = vld [vmem:[%s222] sm:$0xff]
        %v245 = vld [vmem:[%s222 + $0x8] sm:$0xf]
        %v248 = vcombine.low %v244, %v244
        %v249 = vcombine.low %v245, %v245
        %250 = vrot.lane.b32.xlu0 %v248, 127
        %v251 = vpop.permute.xlu0 %250
        %252 = vrot.lane.b32.xlu0 %v244, 127
        %v253 = vpop.permute.xlu0 %252
        %254 = vrot.lane.b32.xlu0 %v249, 127
        %v255 = vpop.permute.xlu0 %254
        %vm256 = vcmask 1039360
        %v257 = vsel %vm256, %v251, %v253
        %v258 = vsel %vm256, %v253, %v255
        %261 = vst [vmem:[#allocation2] sm:$0xf0] %v257
        %262 = vst [vmem:[#allocation2 + $0x8] sm:$0xf0] %v258
        %v263 = vld [vmem:[%s222] sm:$0xff]
        %v264 = vld [vmem:[%s222 + $0x8] sm:$0xf]
        %s265 = scalar_lea.vmem %s1, 1
        %v266 = vld [vmem:[%s265] ss:$2 sm:$0x3]
        %v268 = vlaneseq
        %v269 = vshrl.u32 %v268, 7
        %v270 = vsub.s32 0, %v269
        %v271 = vrot.slane %v266, %v270
        %v272 = vlaneseq
        %v273 = vshrl.u32 %v272, 7
        %v274 = vsub.s32 1, %v273
        %v275 = vrot.slane %v266, %v274
        %v276 = vcombine.low %v271, %v275
        %277 = vrot.lane.b32.xlu0 %v276, 2
        %v278 = vpop.permute.xlu0 %277
        %v279 = vrot.slane %v278, 4
        %vm280 = vcmask 15360
        %v281 = vsel %vm280, %v279, %v278
        %v284 = vmul.f32 %v263, %v281
        %v285 = vmul.f32 %v264, %v279
        %v288 = vcombine.high %v284, %v284
        %289 = vrot.lane.b32.xlu0 %v284, 126
        %v290 = vpop.permute.xlu0 %289
        %291 = vrot.lane.b32.xlu0 %v288, 126
        %v292 = vpop.permute.xlu0 %291
        %293 = vrot.lane.b32.xlu0 %v285, 126
        %v294 = vpop.permute.xlu0 %293
        %vm295 = vcmask 1031168
        %v296 = vsel %vm295, %v290, %v292
        %v297 = vsel %vm295, %v292, %v294
        %300 = vst [vmem:[#allocation2 + $0x10] sm:$0xf] %v296
        %301 = vst [vmem:[#allocation2 + $0x18] sm:$0xf] %v297
        %v302 = vld [vmem:[%s222] sm:$0xff]
        %v303 = vld [vmem:[%s222 + $0x8] sm:$0xf]
        %v304 = vld [vmem:[%s1] ss:$2 sm:$0x3]
        %v306 = vlaneseq
        %v307 = vshrl.u32 %v306, 7
        %v308 = vsub.s32 0, %v307
        %v309 = vrot.slane %v304, %v308
        %v310 = vlaneseq
        %v311 = vshrl.u32 %v310, 7
        %v312 = vsub.s32 1, %v311
        %v313 = vrot.slane %v304, %v312
        %v314 = vcombine.low %v309, %v313
        %315 = vrot.lane.b32.xlu0 %v314, 16
        %v316 = vpop.permute.xlu0 %315
        %v317 = vrot.slane %v316, 4
        %vm318 = vcmask 130048
        %v319 = vsel %vm318, %v317, %v316
        %v322 = vmul.f32 %v302, %v319
        %v323 = vmul.f32 %v303, %v317
        %v326 = vcombine.low %v322, %v322
        %v327 = vcombine.low %v323, %v323
        %328 = vrot.lane.b32.xlu0 %v326, 112
        %v329 = vpop.permute.xlu0 %328
        %330 = vrot.lane.b32.xlu0 %v322, 112
        %v331 = vpop.permute.xlu0 %330
        %332 = vrot.lane.b32.xlu0 %v327, 112
        %v333 = vpop.permute.xlu0 %332
        %vm334 = vcmask 916480
        %v335 = vsel %vm334, %v329, %v331
        %v336 = vsel %vm334, %v331, %v333
        %339 = vst [vmem:[#allocation2 + $0x10] sm:$0xf0] %v335
        %340 = vst [vmem:[#allocation2 + $0x18] sm:$0xf0] %v336
        %v341 = vld [vmem:[%s222] sm:$0xff]
        %v342 = vld [vmem:[%s222 + $0x8] sm:$0xf]
        %v345 = vcombine.high %v341, %v341
        %346 = vrot.lane.b32.xlu0 %v341, 111
        %v347 = vpop.permute.xlu0 %346
        %348 = vrot.lane.b32.xlu0 %v345, 111
        %v349 = vpop.permute.xlu0 %348
        %350 = vrot.lane.b32.xlu0 %v342, 111
        %v351 = vpop.permute.xlu0 %350
        %vm352 = vcmask 908288
        %v353 = vsel %vm352, %v347, %v349
        %v354 = vsel %vm352, %v349, %v351
        %357 = vst [vmem:[#allocation2 + $0x20] sm:$0xf] %v353
        %358 = vst [vmem:[#allocation2 + $0x28] sm:$0xf] %v354
        %v359 = vld [vmem:[%s222] sm:$0xff]
        %v360 = vld [vmem:[%s222 + $0x8] sm:$0xf]
        %v361 = vld [vmem:[%s265] ss:$2 sm:$0x3]
        %v363 = vlaneseq
        %v364 = vshrl.u32 %v363, 7
        %v365 = vsub.s32 0, %v364
        %v366 = vrot.slane %v361, %v365
        %v367 = vlaneseq
        %v368 = vshrl.u32 %v367, 7
        %v369 = vsub.s32 1, %v368
        %v370 = vrot.slane %v361, %v369
        %v371 = vcombine.low %v366, %v370
        %372 = vrot.lane.b32.xlu0 %v371, 18
        %v373 = vpop.permute.xlu0 %372
        %v374 = vrot.slane %v373, 4
        %vm375 = vcmask 146432
        %v376 = vsel %vm375, %v374, %v373
        %v379 = vmul.f32 %v359, %v376
        %v380 = vmul.f32 %v360, %v374
        %v383 = vcombine.low %v379, %v379
        %v384 = vcombine.low %v380, %v380
        %385 = vrot.lane.b32.xlu0 %v383, 110
        %v386 = vpop.permute.xlu0 %385
        %387 = vrot.lane.b32.xlu0 %v379, 110
        %v388 = vpop.permute.xlu0 %387
        %389 = vrot.lane.b32.xlu0 %v384, 110
        %v390 = vpop.permute.xlu0 %389
        %vm391 = vcmask 900096
        %v392 = vsel %vm391, %v386, %v388
        %v393 = vsel %vm391, %v388, %v390
        %396 = vst [vmem:[#allocation2 + $0x20] sm:$0xf0] %v392
        %397 = vst [vmem:[#allocation2 + $0x28] sm:$0xf0] %v393
        %v398 = vld [vmem:[%s222] sm:$0xff]
        %v399 = vld [vmem:[%s222 + $0x8] sm:$0xf]
        %v400 = vld [vmem:[%s1] ss:$2 sm:$0x3]
        %v402 = vlaneseq
        %v403 = vshrl.u32 %v402, 7
        %v404 = vsub.s32 0, %v403
        %v405 = vrot.slane %v400, %v404
        %v406 = vlaneseq
        %v407 = vshrl.u32 %v406, 7
        %v408 = vsub.s32 1, %v407
        %v409 = vrot.slane %v400, %v408
        %v410 = vcombine.low %v405, %v409
        %411 = vrot.lane.b32.xlu0 %v410, 32
        %v412 = vpop.permute.xlu0 %411
        %v413 = vrot.slane %v412, 4
        %vm414 = vcmask 261120
        %v415 = vsel %vm414, %v413, %v412
        %v418 = vmul.f32 %v398, %v415
        %v419 = vmul.f32 %v399, %v413
        %v422 = vcombine.high %v418, %v418
        %423 = vrot.lane.b32.xlu0 %v418, 96
        %v424 = vpop.permute.xlu0 %423
        %425 = vrot.lane.b32.xlu0 %v422, 96
        %v426 = vpop.permute.xlu0 %425
        %427 = vrot.lane.b32.xlu0 %v419, 96
        %v428 = vpop.permute.xlu0 %427
        %vm429 = vcmask 785408
        %v430 = vsel %vm429, %v424, %v426
        %v431 = vsel %vm429, %v426, %v428
        %434 = vst [vmem:[#allocation2 + $0x30] sm:$0xf] %v430
        %435 = vst [vmem:[#allocation2 + $0x38] sm:$0xf] %v431
        %v436 = vld [vmem:[%s222] sm:$0xff]
        %v437 = vld [vmem:[%s222 + $0x8] sm:$0xf]
        %v440 = vcombine.low %v436, %v436
        %v441 = vcombine.low %v437, %v437
        %442 = vrot.lane.b32.xlu0 %v440, 95
        %v443 = vpop.permute.xlu0 %442
        %444 = vrot.lane.b32.xlu0 %v436, 95
        %v445 = vpop.permute.xlu0 %444
        %446 = vrot.lane.b32.xlu0 %v441, 95
        %v447 = vpop.permute.xlu0 %446
        %vm448 = vcmask 777216
        %v449 = vsel %vm448, %v443, %v445
        %v450 = vsel %vm448, %v445, %v447
        %453 = vst [vmem:[#allocation2 + $0x30] sm:$0xf0] %v449
        %454 = vst [vmem:[#allocation2 + $0x38] sm:$0xf0] %v450
        %v455 = vld [vmem:[%s222] sm:$0xff]
        %v456 = vld [vmem:[%s222 + $0x8] sm:$0xf]
        %v457 = vld [vmem:[%s265] ss:$2 sm:$0x3]
        %v459 = vlaneseq
        %v460 = vshrl.u32 %v459, 7
        %v461 = vsub.s32 0, %v460
        %v462 = vrot.slane %v457, %v461
        %v463 = vlaneseq
        %v464 = vshrl.u32 %v463, 7
        %v465 = vsub.s32 1, %v464
        %v466 = vrot.slane %v457, %v465
        %v467 = vcombine.low %v462, %v466
        %468 = vrot.lane.b32.xlu0 %v467, 34
        %v469 = vpop.permute.xlu0 %468
        %v470 = vrot.slane %v469, 4
        %vm471 = vcmask 277504
        %v472 = vsel %vm471, %v470, %v469
        %v475 = vmul.f32 %v455, %v472
        %v476 = vmul.f32 %v456, %v470
        %v479 = vcombine.high %v475, %v475
        %480 = vrot.lane.b32.xlu0 %v475, 94
        %v481 = vpop.permute.xlu0 %480
        %482 = vrot.lane.b32.xlu0 %v479, 94
        %v483 = vpop.permute.xlu0 %482
        %484 = vrot.lane.b32.xlu0 %v476, 94
        %v485 = vpop.permute.xlu0 %484
        %vm486 = vcmask 769024
        %v487 = vsel %vm486, %v481, %v483
        %v488 = vsel %vm486, %v483, %v485
        %491 = vst [vmem:[#allocation2 + $0x40] sm:$0xf] %v487
        %492 = vst [vmem:[#allocation2 + $0x48] sm:$0xf] %v488
        %v493 = vld [vmem:[%s2] sm:$0xff]
        %v494 = vld [vmem:[%s2 + $0x8] sm:$0xff]
        %v495 = vld [vmem:[%s2 + $0x10] sm:$0xff]
        %v496 = vld [vmem:[%s2 + $0x18] sm:$0xff]
        %v497 = vld [vmem:[#allocation2] sm:$0xff]
        %v498 = vld [vmem:[#allocation2 + $0x8] sm:$0xff]
        %v499 = vld [vmem:[#allocation2 + $0x10] sm:$0xff]
        %v500 = vld [vmem:[#allocation2 + $0x18] sm:$0xff]
        %v501 = vld [vmem:[#allocation2 + $0x20] sm:$0xff]
        %v502 = vld [vmem:[#allocation2 + $0x28] sm:$0xff]
        %v503 = vld [vmem:[#allocation2 + $0x30] sm:$0xff]
        %v504 = vld [vmem:[#allocation2 + $0x38] sm:$0xff]
        %v505 = vld [vmem:[#allocation2 + $0x40] sm:$0xff]
        %v506 = vld [vmem:[#allocation2 + $0x48] sm:$0xff]
        %vm507 = vcmask 326656
        %v509 = vsel %vm507, %v493, 0
        %v512 = vsel %vm507, %v494, 0
        %v515 = vsel %vm507, %v495, 0
        %v518 = vsel %vm507, %v496, 0
        %520 = vmatprep.subr.mxu0 %v498
        %521 = vmatpush1.msra.mxu0 %v497
        %522 = vmatprep.subr.mxu0 %v500
        %523 = vmatpush1.msra.mxu0 %v499
        %524 = vmatprep.subr.mxu0 %v502
        %525 = vmatpush1.msra.mxu0 %v501
        %526 = vmatprep.subr.mxu0 %v504
        %527 = vmatpush1.msra.mxu0 %v503
        %528 = vmatprep.subr.mxu0 %v506
        %529 = vmatpush1.msra.mxu0 %v505
        %530 = vmatprep.subr.mxu0 0.0
        %531 = vmatpush1.msra.mxu0 0.0
        %532 = vmatprep.subr.mxu0 0.0
        %533 = vmatpush1.msra.mxu0 0.0
        %534 = vmatprep.subr.mxu0 0.0
        %535 = vmatpush1.msra.mxu0 0.0
        %536 = vmatprep.subr.mxu0 0.0
        %537 = vmatpush1.msra.mxu0 0.0
        %538 = vmatprep.subr.mxu0 0.0
        %539 = vmatpush1.msra.mxu0 0.0
        %540 = vmatprep.subr.mxu0 0.0
        %541 = vmatpush1.msra.mxu0 0.0
        %542 = vmatprep.subr.mxu0 0.0
        %543 = vmatpush1.msra.mxu0 0.0
        %544 = vmatprep.subr.mxu0 0.0
        %545 = vmatpush1.msra.mxu0 0.0
        %546 = vmatprep.subr.mxu0 0.0
        %547 = vmatpush1.msra.mxu0 0.0
        %548 = vmatprep.subr.mxu0 0.0
        %549 = vmatpush1.msra.mxu0 0.0
        %550 = vmatprep.subr.mxu0 0.0
        %551 = vmatpush1.msra.mxu0 0.0
        %552 = vmatprep.subr.mxu0 0.0
        %553 = vmatpush1.msra.mxu0 0.0
        %554 = vmatprep.subr.mxu0 0.0
        %555 = vmatpush1.msra.mxu0 0.0
        %556 = vmatprep.subr.mxu0 0.0
        %557 = vmatpush1.msra.mxu0 0.0
        %558 = vmatprep.subr.mxu0 0.0
        %559 = vmatpush1.msra.mxu0 0.0
        %560 = vmatprep.subr.mxu0 0.0
        %561 = vmatpush1.msra.mxu0 0.0
        %562 = vmatprep.subr.mxu0 0.0
        %563 = vmatpush1.msra.mxu0 0.0
        %564 = vmatprep.subr.mxu0 0.0
        %565 = vmatpush1.msra.mxu0 0.0
        %566 = vmatprep.subr.mxu0 0.0
        %567 = vmatpush1.msra.mxu0 0.0
        %568 = vmatprep.subr.mxu0 0.0
        %569 = vmatpush1.msra.mxu0 0.0
        %570 = vmatprep.subr.mxu0 0.0
        %571 = vmatpush1.msra.mxu0 0.0
        %572 = vmatprep.subr.mxu0 0.0
        %573 = vmatpush1.msra.mxu0 0.0
        %574 = vmatprep.subr.mxu0 0.0
        %575 = vmatpush1.msra.mxu0 0.0
        %576 = vmatprep.subr.mxu0 0.0
        %577 = vmatpush1.msra.mxu0 0.0
        %578 = vmatprep.subr.mxu0 0.0
        %579 = vmatpush1.msra.mxu0 0.0
        %580 = vmatprep.subr.mxu0 0.0
        %581 = vmatpush1.msra.mxu0 0.0
        %582 = vmatprep.subr.mxu0 0.0
        %583 = vmatpush1.msra.mxu0 0.0
        %584 = vmatprep.mubr.f32.mxu0 0.0
        %585 = vmatmul.mubr.f32.gmra.mrb[0].mxu0 %v509
        %v586 = vpop.f32.mrb[0].mxu0
        %v587 = vadd.f32 0.0, %v586
        %v588 = vpop.f32.mrb[0].mxu0
        %v589 = vadd.f32 0.0, %v588
        %590 = vmatprep.mubr.f32.mxu0 0.0
        %591 = vmatmul.mubr.f32.gmra.mrb[0].mxu0 %v512
        %v592 = vpop.f32.mrb[0].mxu0
        %v593 = vadd.f32 0.0, %v592
        %v594 = vpop.f32.mrb[0].mxu0
        %v595 = vadd.f32 0.0, %v594
        %596 = vmatprep.mubr.f32.mxu0 0.0
        %597 = vmatmul.mubr.f32.gmra.mrb[0].mxu0 %v515
        %v598 = vpop.f32.mrb[0].mxu0
        %v599 = vadd.f32 0.0, %v598
        %v600 = vpop.f32.mrb[0].mxu0
        %v601 = vadd.f32 0.0, %v600
        %602 = vmatprep.mubr.f32.mxu0 0.0
        %603 = vmatmul.mubr.f32.gmra.mrb[0].mxu0 %v518
        %v604 = vpop.f32.mrb[0].mxu0
        %v605 = vadd.f32 0.0, %v604
        %v606 = vpop.f32.mrb[0].mxu0
        %v607 = vadd.f32 0.0, %v606
        %608 = vdwg.mxu0
        %v609 = vld [vmem:[%s3] sm:$0xff]
        %v610 = vld [vmem:[%s3 + $0x8] sm:$0xff]
        %v611 = vld [vmem:[%s3 + $0x10] sm:$0xff]
        %v612 = vld [vmem:[%s3 + $0x18] sm:$0xff]
        %614 = vset.pattern.permute.xlu0 0
        %615 = vperm.xlu0 %614, %v609
        %v616 = vpop.permute.xlu0 %615
        %619 = vset.pattern.permute.xlu0 0
        %620 = vperm.xlu0 %619, %v610
        %v621 = vpop.permute.xlu0 %620
        %624 = vset.pattern.permute.xlu0 0
        %625 = vperm.xlu0 %624, %v611
        %v626 = vpop.permute.xlu0 %625
        %629 = vset.pattern.permute.xlu0 0
        %630 = vperm.xlu0 %629, %v612
        %v631 = vpop.permute.xlu0 %630
        %v633 = vmul.f32 %v587, %v616
        %v634 = vmul.f32 %v589, %v616
        %v635 = vmul.f32 %v593, %v621
        %v636 = vmul.f32 %v595, %v621
        %v637 = vmul.f32 %v599, %v626
        %v638 = vmul.f32 %v601, %v626
        %v639 = vmul.f32 %v605, %v631
        %v640 = vmul.f32 %v607, %v631
        %v641 = vld [vmem:[%s4] sm:$0xff]
        %v642 = vld [vmem:[%s4 + $0x8] sm:$0xff]
        %v643 = vld [vmem:[%s4 + $0x10] sm:$0xff]
        %v644 = vld [vmem:[%s4 + $0x18] sm:$0xff]
        %646 = vset.pattern.permute.xlu0 0
        %647 = vperm.xlu0 %646, %v641
        %v648 = vpop.permute.xlu0 %647
        %651 = vset.pattern.permute.xlu0 0
        %652 = vperm.xlu0 %651, %v642
        %v653 = vpop.permute.xlu0 %652
        %656 = vset.pattern.permute.xlu0 0
        %657 = vperm.xlu0 %656, %v643
        %v658 = vpop.permute.xlu0 %657
        %661 = vset.pattern.permute.xlu0 0
        %662 = vperm.xlu0 %661, %v644
        %v663 = vpop.permute.xlu0 %662
        %v665 = vadd.f32 %v633, %v648
        %v666 = vadd.f32 %v634, %v648
        %v667 = vadd.f32 %v635, %v653
        %v668 = vadd.f32 %v636, %v653
        %v669 = vadd.f32 %v637, %v658
        %v670 = vadd.f32 %v638, %v658
        %v671 = vadd.f32 %v639, %v663
        %v672 = vadd.f32 %v640, %v663
        %v673 = vmax.f32 %v665, 0.0
        %v674 = vmax.f32 %v666, 0.0
        %v675 = vmax.f32 %v667, 0.0
        %v676 = vmax.f32 %v668, 0.0
        %v677 = vmax.f32 %v669, 0.0
        %v678 = vmax.f32 %v670, 0.0
        %v679 = vmax.f32 %v671, 0.0
        %v680 = vmax.f32 %v672, 0.0
        %681 = vst [vmem:[%s217] sm:$0xff] %v673
        %682 = vst [vmem:[%s217 + $0x8] sm:$0xff] %v674
        %683 = vst [vmem:[%s217 + $0x10] sm:$0xff] %v675
        %684 = vst [vmem:[%s217 + $0x18] sm:$0xff] %v676
        %685 = vst [vmem:[%s217 + $0x20] sm:$0xff] %v677
        %686 = vst [vmem:[%s217 + $0x28] sm:$0xff] %v678
        %687 = vst [vmem:[%s217 + $0x30] sm:$0xff] %v679
        %688 = vst [vmem:[%s217 + $0x38] sm:$0xff] %v680
        %s689 = sand.u32 %s137, 1
        %s690 = scalar_lea.sflag [#allocation4], %s689
        %s691 = sand.u32 %s137, 1
        %s692 = smul.addr %s691, 64
        %s693 = scalar_lea.vmem [#allocation3], %s692
        // Predicated region
        $region41: #{tpu_custom_call.1} parent=39 // pred_check
          %p694 = pneg %p147
        $region42: #{tpu_custom_call.1} parent=39 // pred_check_branch
          %696 = sbr.rel (%p694) target = $region44
        $region43: #{tpu_custom_call.1} parent=39 // pred_region
          %s698 = ssub.s32 1024, 1024
          %699 = vsyncadd %s690, %s698
          %s700 = smul.addr %s19, 8
          %s701 = smul.addr %s700, 128
          %s702 = scalar_lea.hbm %s5, %s701
          %s703 = sshll.u32 %s693, 4
          %s704 = int_to_ptr.vmem [resolvable:$true] %s703
          %709 = dma.vmem_to_hbm [thread:$0]  %s704, 1024, %s702, %s690, 256, 256, 16
        $region44: #{tpu_custom_call.1} parent=39 // pred_fallthru
          _
      $region40: #{tpu_custom_call.1} parent=5 // pred_fallthru
        _
      %p710 = scmp.le.s32.totalorder 2, %s14
      // Predicated region
      $region45: #{tpu_custom_call.1} parent=5 // pred_check
        %p711 = pneg %p710
      $region46: #{tpu_custom_call.1} parent=5 // pred_check_branch
        %713 = sbr.rel (%p711) target = $region48
      $region47: #{tpu_custom_call.1} parent=5 // pred_region
        %s714 = ssub.s32 %s14, 2
        // Predicated region
        $region49: #{tpu_custom_call.1} parent=47 // pred_check
          %p715 = pneg %p153
        $region50: #{tpu_custom_call.1} parent=47 // pred_check_branch
          %717 = sbr.rel (%p715) target = $region52
        $region51: #{tpu_custom_call.1} parent=47 // pred_region
          %s718 = sand.u32 %s138, 1
          %s719 = scalar_lea.sflag [#allocation4], %s718
          %s720 = sand.u32 %s138, 1
          %s721 = smul.addr %s720, 64
          %s722 = scalar_lea.vmem [#allocation3], %s721
          %723 = dma.done %s719, 1024
        $region52: #{tpu_custom_call.1} parent=47 // pred_fallthru
          _
      $region48: #{tpu_custom_call.1} parent=5 // pred_fallthru
        _
    $region6: #{tpu_custom_call.1} parent=1 // loop_footer
      %s18 = sadd.s32 1, %s14
    $region7: #{tpu_custom_call.1} parent=1 // loop_footer_branch
      %13 = sbr.rel target = $region3
    $region8: #{tpu_custom_call.1} parent=1 // loop_exit
      _
    %724 = vsyncpa [#allocation4], 1
    %s725 = scalar_lea.sflag [#allocation4], 1
    %726 = vsyncpa %s725, 1

</llo_original>
